<compile_context>
chip_gen: v7x
topology: tpu7x:2x2x1
jax: 0.10.0
libtpu: 0.0.40
codegen_flags: <defaults>
</compile_context>

<pallas_src>
import jax
import jax.numpy as jnp
from jax.experimental import pallas as pl
from jax.experimental.pallas import tpu as pltpu

CLAMP_MIN = 0.1
CLAMP_MAX = 0.5


def _round_up(x, m):
    return (x + m - 1) // m * m


# ---------------------------------------------------------------------------
# Kernel 1: fused conv1(1x1,s2,p4)+clamp + conv2(2x2,s5,p2)+clamp, lane-dense.
#   a_ref  : (16, TM)  rows = 4*t + c ; t = 2*dh+dw conv2 tap, c in {0,1,2}
#                      input channel, c = 3 validity flag (conv2 zero-pad).
#   w1_ref : (24, 16)  block-diag conv1 weight (rows = (t, conv1-out-ch))
#   sel_ref: (24, 16)  selects the per-tap validity row for each conv1 row
#   b1_ref : (24, 1)   conv1 bias per row
#   w2_ref : (8, 24)   conv2 weight mapping (t, conv1-out-ch) -> out channel
#   b2_ref : (8, 1)    conv2 bias
#   o_ref  : (8, TM)   clamped conv2 output, M (positions) on lanes.
# ---------------------------------------------------------------------------
def _conv12_kernel(a_ref, w1_ref, sel_ref, b1_ref, w2_ref, b2_ref, o_ref):
    a = a_ref[...]                                               # (16, TM)
    v1 = jnp.dot(w1_ref[...], a, preferred_element_type=jnp.float32)
    v1 = jnp.clip(v1 + b1_ref[...], CLAMP_MIN, CLAMP_MAX)        # (24, TM)
    # zero out taps that fall in conv2's zero-padding region
    v1 = v1 * jnp.dot(sel_ref[...], a, preferred_element_type=jnp.float32)
    out = jnp.dot(w2_ref[...], v1, preferred_element_type=jnp.float32)
    o_ref[...] = jnp.clip(out + b2_ref[...], CLAMP_MIN, CLAMP_MAX)


# ---------------------------------------------------------------------------
# Kernel 2: ConvTranspose2d via sub-pixel phase decomposition, batch flattened
# into MXU rows: (TM2, 72) @ (72, 96) + bias.
#   rows    = (n, bh, bw) coarse output positions
#   K = 72  = (th, tw, ci)   3x3 coarse taps x 8 input channels
#   cols 96 = (ph, pw, co)   16 sub-pixel phases x 6 output channels
# ---------------------------------------------------------------------------
def _conv3_kernel(p_ref, w_ref, b_ref, o_ref):
    o_ref[...] = (jnp.dot(p_ref[...], w_ref[...],
                          preferred_element_type=jnp.float32) + b_ref[...])


# ---------------------------------------------------------------------------
# Forward pass (wrapper boundary is NCHW, matching PyTorch)
# ---------------------------------------------------------------------------
def _model_forward_impl(x_nchw, params):
    N, Cin, H, W = x_nchw.shape
    assert Cin == 3
    # derived spatial sizes
    H1 = (H + 2 * 4 - 1) // 2 + 1            # conv1 output
    W1 = (W + 2 * 4 - 1) // 2 + 1
    H2 = (H1 + 2 * 2 - 2) // 5 + 1           # conv2 output
    W2 = (W1 + 2 * 2 - 2) // 5 + 1
    H3 = (H2 - 1) * 4 + 9                    # conv-transpose output
    W3 = (W2 - 1) * 4 + 9
    M = N * H2 * W2

    # --- gather the input pixels that feed each conv2 tap (lane-dense) ----
    # conv2 output (h2,w2) tap (dh,dw) -> conv1 output r1 = 5*h2 - 2 + dh
    # conv1 output r1               -> input row 2*r1 - 4 = 10*h2 + 2*dh - 8
    pa_h = max(0, 10 * H2 - 15 - H)
    pa_w = max(0, 10 * W2 - 15 - W)
    xp = jnp.pad(x_nchw, ((0, 0), (0, 0), (8, pa_h), (8, pa_w)))

    rh = 5 * jnp.arange(H2)[:, None] - 2 + jnp.arange(2)[None, :]   # (H2, 2)
    rw = 5 * jnp.arange(W2)[:, None] - 2 + jnp.arange(2)[None, :]   # (W2, 2)
    ok_h = ((rh >= 0) & (rh < H1)).astype(jnp.float32)
    ok_w = ((rw >= 0) & (rw < W1)).astype(jnp.float32)

    rows = []
    for dh in range(2):
        for dw in range(2):
            t = xp[:, :, 2 * dh::10, 2 * dw::10][:, :, :H2, :W2]    # (N,3,H2,W2)
            for c in range(3):
                rows.append(t[:, c].reshape(M))
            v = ok_h[:, dh][:, None] * ok_w[:, dw][None, :]         # (H2, W2)
            rows.append(jnp.broadcast_to(v[None], (N, H2, W2)).reshape(M))
    a_taps = jnp.stack(rows, axis=0)                                # (16, M)

    TM = min(512, _round_up(M, 128))
    M_pad = _round_up(M, TM)
    a_taps = jnp.pad(a_taps, ((0, 0), (0, M_pad - M)))              # (16, M_pad)

    # --- tiny constant weight matrices for kernel 1 ------------------------
    w1 = params["w1"].reshape(5, 3)                 # [co1, ci]
    w2 = params["w2"]                               # [co2, co1, dh, dw]
    w1_blk = jnp.zeros((24, 16), jnp.float32)
    sel = jnp.zeros((24, 16), jnp.float32)
    b1c = jnp.zeros((24, 1), jnp.float32)
    w2m = jnp.zeros((8, 24), jnp.float32)
    for t in range(4):
        dh, dw = divmod(t, 2)
        w1_blk = w1_blk.at[t * 5:t * 5 + 5, t * 4:t * 4 + 3].set(w1)
        sel = sel.at[t * 5:t * 5 + 5, t * 4 + 3].set(1.0)
        b1c = b1c.at[t * 5:t * 5 + 5, 0].set(params["b1"])
        w2m = w2m.at[:, t * 5:t * 5 + 5].set(w2[:, :, dh, dw])
    b2c = params["b2"].reshape(8, 1)

    v2 = pl.pallas_call(
        _conv12_kernel,
        out_shape=jax.ShapeDtypeStruct((8, M_pad), jnp.float32),
        grid=(M_pad // TM,),
        in_specs=[
            pl.BlockSpec((16, TM), lambda i: (0, i)),
            pl.BlockSpec((24, 16), lambda i: (0, 0)),
            pl.BlockSpec((24, 16), lambda i: (0, 0)),
            pl.BlockSpec((24, 1), lambda i: (0, 0)),
            pl.BlockSpec((8, 24), lambda i: (0, 0)),
            pl.BlockSpec((8, 1), lambda i: (0, 0)),
        ],
        out_specs=pl.BlockSpec((8, TM), lambda i: (0, i)),
        compiler_params=pltpu.CompilerParams(
            dimension_semantics=("parallel",)),
    )(a_taps, w1_blk, sel, b1c, w2m, b2c)

    # --- conv-transpose, sub-pixel decomposition, batch flattened ----------
    # y[n,co,4bh+ph,4bw+pw] = b3[co]
    #   + sum_{th,tw,ci} w3[ci,co,ph+4th,pw+4tw] * v2[n, ci, bh-th, bw-tw]
    v2 = v2[:, :M].reshape(8, N, H2, W2)
    v2 = jnp.transpose(v2, (1, 2, 3, 0))                      # (N, H2, W2, 8)
    BH, BW = H2 + 2, W2 + 2
    BHW = BH * BW
    v2p = jnp.pad(v2, ((0, 0), (2, 2), (2, 2), (0, 0)))       # (N, H2+4, W2+4, 8)
    cols = []
    for th in range(3):
        for tw in range(3):
            cols.append(v2p[:, 2 - th:2 - th + BH, 2 - tw:2 - tw + BW, :])
    patches = jnp.stack(cols, axis=3).reshape(N * BHW, 72)    # (N*BHW, 72)

    R = N * BHW
    TM2 = min(512, _round_up(R, 8))
    R_pad = _round_up(R, TM2)
    patches = jnp.pad(patches, ((0, R_pad - R), (0, 0)))

    w3 = params["w3"]                                         # (8, 6, 9, 9)
    w3p = jnp.pad(w3, ((0, 0), (0, 0), (0, 3), (0, 3)))       # (8, 6, 12, 12)
    w3r = w3p.reshape(8, 6, 3, 4, 3, 4)                       # [ci,co,th,ph,tw,pw]
    w3m = jnp.transpose(w3r, (2, 4, 0, 3, 5, 1)).reshape(72, 96)
    b3m = jnp.tile(params["b3"], 16).reshape(1, 96)

    y = pl.pallas_call(
        _conv3_kernel,
        out_shape=jax.ShapeDtypeStruct((R_pad, 96), jnp.float32),
        grid=(R_pad // TM2,),
        in_specs=[
            pl.BlockSpec((TM2, 72), lambda i: (i, 0)),
            pl.BlockSpec((72, 96), lambda i: (0, 0)),
            pl.BlockSpec((1, 96), lambda i: (0, 0)),
        ],
        out_specs=pl.BlockSpec((TM2, 96), lambda i: (i, 0)),
        compiler_params=pltpu.CompilerParams(
            dimension_semantics=("parallel",)),
        cost_estimate=pl.CostEstimate(
            flops=2 * R_pad * 72 * 96,
            transcendentals=0,
            bytes_accessed=4 * (R_pad * 72 + 72 * 96 + 96 + R_pad * 96)),
    )(patches, w3m, b3m)

    # depth-to-space: (n, bh, bw, (ph,pw,co)) -> (N, 6, H3, W3)
    y = y[:R].reshape(N, BH, BW, 4, 4, 6)
    y = jnp.transpose(y, (0, 5, 1, 3, 2, 4)).reshape(N, 6, 4 * BH, 4 * BW)
    return y[:, :, :H3, :W3]


model_forward = jax.jit(_model_forward_impl)


# ---------------------------------------------------------------------------
# Parameter init (PyTorch-style uniform) and pure-JAX reference
# ---------------------------------------------------------------------------
def init_params(key):
    def uinit(k, shape, fan_in):
        bound = 1.0 / jnp.sqrt(fan_in)
        return jax.random.uniform(k, shape, jnp.float32, -bound, bound)

    ks = jax.random.split(key, 6)
    return {
        # Conv2d(3, 5, 1, stride=2, padding=4)
        "w1": uinit(ks[0], (5, 3, 1, 1), 3 * 1 * 1),
        "b1": uinit(ks[1], (5,), 3 * 1 * 1),
        # Conv2d(5, 8, 2, stride=5, padding=2)
        "w2": uinit(ks[2], (8, 5, 2, 2), 5 * 2 * 2),
        "b2": uinit(ks[3], (8,), 5 * 2 * 2),
        # ConvTranspose2d(8, 6, 9, stride=4, padding=0): weight [Cin=8,Cout=6,9,9]
        "w3": uinit(ks[4], (8, 6, 9, 9), 6 * 9 * 9),
        "b3": uinit(ks[5], (6,), 6 * 9 * 9),
    }


def ref_forward(x, params):
    dn = ("NCHW", "OIHW", "NCHW")
    v = jax.lax.conv_general_dilated(x, params["w1"], (2, 2), [(4, 4), (4, 4)],
                                     dimension_numbers=dn) \
        + params["b1"][None, :, None, None]
    v = jnp.clip(v, CLAMP_MIN, CLAMP_MAX)
    v = jax.lax.conv_general_dilated(v, params["w2"], (5, 5), [(2, 2), (2, 2)],
                                     dimension_numbers=dn) \
        + params["b2"][None, :, None, None]
    v = jnp.clip(v, CLAMP_MIN, CLAMP_MAX)
    w3_eq = jnp.transpose(jnp.flip(params["w3"], (2, 3)), (1, 0, 2, 3))
    v = jax.lax.conv_general_dilated(v, w3_eq, (1, 1), [(8, 8), (8, 8)],
                                     lhs_dilation=(4, 4),
                                     dimension_numbers=dn) \
        + params["b3"][None, :, None, None]
    return v


if __name__ == "__main__":
    key = jax.random.PRNGKey(0)
    k_param, k_x = jax.random.split(key)
    params = init_params(k_param)

    # small input consistent with the module (N, 3, H, W)
    x = jax.random.normal(k_x, (2, 3, 32, 32), jnp.float32)

    out = jax.block_until_ready(model_forward(x, params))   # (2, 6, 25, 25)
    ref = jax.block_until_ready(ref_forward(x, params))

    assert out.shape == (2, 6, 25, 25), out.shape
    assert jnp.max(jnp.abs(out - ref)) < 1e-4
    print("KERNEL_OK")
</pallas_src>

<mosaic_0001>
module attributes {stable_mosaic.version = 11 : i64} {
  func.func @_conv12_kernel(%arg0: i32, %arg1: memref<16x128xf32, #tpu.memory_space<vmem>>, %arg2: memref<24x16xf32, #tpu.memory_space<vmem>>, %arg3: memref<24x16xf32, #tpu.memory_space<vmem>>, %arg4: memref<24x1xf32, #tpu.memory_space<vmem>>, %arg5: memref<8x24xf32, #tpu.memory_space<vmem>>, %arg6: memref<8x1xf32, #tpu.memory_space<vmem>>, %arg7: memref<8x128xf32, #tpu.memory_space<vmem>>) attributes {dimension_semantics = [#tpu.dimension_semantics<parallel>], iteration_bounds = array<i64: 1>, scalar_prefetch = 0 : i64, scratch_operands = 0 : i64, tpu.core_type = #tpu.core_type<tc>, window_params = [{transform_indices = @transform_0, window_bounds = array<i64: 16, 128>}, {pipeline_mode = #tpu.pipeline_mode<synchronous>, transform_indices = @transform_1, window_bounds = array<i64: 24, 16>}, {pipeline_mode = #tpu.pipeline_mode<synchronous>, transform_indices = @transform_2, window_bounds = array<i64: 24, 16>}, {pipeline_mode = #tpu.pipeline_mode<synchronous>, transform_indices = @transform_3, window_bounds = array<i64: 24, 1>}, {pipeline_mode = #tpu.pipeline_mode<synchronous>, transform_indices = @transform_4, window_bounds = array<i64: 8, 24>}, {pipeline_mode = #tpu.pipeline_mode<synchronous>, transform_indices = @transform_5, window_bounds = array<i64: 8, 1>}, {transform_indices = @transform_6, window_bounds = array<i64: 8, 128>}]} {
    %c0 = arith.constant 0 : index
    %c0_0 = arith.constant 0 : index
    %0 = vector.load %arg1[%c0, %c0_0] : memref<16x128xf32, #tpu.memory_space<vmem>>, vector<16x128xf32>
    %c0_1 = arith.constant 0 : index
    %c0_2 = arith.constant 0 : index
    %1 = vector.load %arg2[%c0_1, %c0_2] : memref<24x16xf32, #tpu.memory_space<vmem>>, vector<24x16xf32>
    %cst = arith.constant dense<0.000000e+00> : vector<24x128xf32>
    %2 = tpu.matmul %1, %0, %cst {dimension_numbers = #tpu.dot_dimension_numbers<[1], [0], [0], [1], [0, 0, 1, 1], [], []>} : vector<24x16xf32>, vector<16x128xf32>, vector<24x128xf32> -> vector<24x128xf32>
    %c0_3 = arith.constant 0 : index
    %c0_4 = arith.constant 0 : index
    %3 = vector.load %arg4[%c0_3, %c0_4] : memref<24x1xf32, #tpu.memory_space<vmem>>, vector<24x1xf32>
    %4 = vector.broadcast %3 : vector<24x1xf32> to vector<24x128xf32>
    %5 = arith.addf %2, %4 : vector<24x128xf32>
    %cst_5 = arith.constant 1.000000e-01 : f32
    %cst_6 = arith.constant 5.000000e-01 : f32
    %6 = vector.broadcast %cst_5 : f32 to vector<24x128xf32>
    %7 = arith.maximumf %6, %5 : vector<24x128xf32>
    %8 = vector.broadcast %cst_6 : f32 to vector<24x128xf32>
    %9 = arith.minimumf %8, %7 : vector<24x128xf32>
    %c0_7 = arith.constant 0 : index
    %c0_8 = arith.constant 0 : index
    %10 = vector.load %arg3[%c0_7, %c0_8] : memref<24x16xf32, #tpu.memory_space<vmem>>, vector<24x16xf32>
    %cst_9 = arith.constant dense<0.000000e+00> : vector<24x128xf32>
    %11 = tpu.matmul %10, %0, %cst_9 {dimension_numbers = #tpu.dot_dimension_numbers<[1], [0], [0], [1], [0, 0, 1, 1], [], []>} : vector<24x16xf32>, vector<16x128xf32>, vector<24x128xf32> -> vector<24x128xf32>
    %12 = arith.mulf %9, %11 : vector<24x128xf32>
    %c0_10 = arith.constant 0 : index
    %c0_11 = arith.constant 0 : index
    %13 = vector.load %arg5[%c0_10, %c0_11] : memref<8x24xf32, #tpu.memory_space<vmem>>, vector<8x24xf32>
    %cst_12 = arith.constant dense<0.000000e+00> : vector<8x128xf32>
    %14 = tpu.matmul %13, %12, %cst_12 {dimension_numbers = #tpu.dot_dimension_numbers<[1], [0], [0], [1], [0, 0, 1, 1], [], []>} : vector<8x24xf32>, vector<24x128xf32>, vector<8x128xf32> -> vector<8x128xf32>
    %c0_13 = arith.constant 0 : index
    %c0_14 = arith.constant 0 : index
    %15 = vector.load %arg6[%c0_13, %c0_14] : memref<8x1xf32, #tpu.memory_space<vmem>>, vector<8x1xf32>
    %16 = vector.broadcast %15 : vector<8x1xf32> to vector<8x128xf32>
    %17 = arith.addf %14, %16 : vector<8x128xf32>
    %cst_15 = arith.constant 1.000000e-01 : f32
    %cst_16 = arith.constant 5.000000e-01 : f32
    %18 = vector.broadcast %cst_15 : f32 to vector<8x128xf32>
    %19 = arith.maximumf %18, %17 : vector<8x128xf32>
    %20 = vector.broadcast %cst_16 : f32 to vector<8x128xf32>
    %21 = arith.minimumf %20, %19 : vector<8x128xf32>
    %c0_17 = arith.constant 0 : index
    %c0_18 = arith.constant 0 : index
    %22 = vector.load %arg7[%c0_17, %c0_18] : memref<8x128xf32, #tpu.memory_space<vmem>>, vector<8x128xf32>
    tpu.vector_store %arg7[%c0_17, %c0_18], %21 {strides = array<i32>} : memref<8x128xf32, #tpu.memory_space<vmem>>, vector<8x128xf32>,
    return
  }
  func.func @transform_0(%arg0: i32) -> (i32, i32) {
    %c0_i32 = arith.constant 0 : i32
    %c0_i32_0 = arith.constant 0 : i32
    return %c0_i32, %arg0 : i32, i32
  }
  func.func @transform_1(%arg0: i32) -> (i32, i32) {
    %c0_i32 = arith.constant 0 : i32
    %c0_i32_0 = arith.constant 0 : i32
    %c0_i32_1 = arith.constant 0 : i32
    return %c0_i32, %c0_i32_0 : i32, i32
  }
  func.func @transform_2(%arg0: i32) -> (i32, i32) {
    %c0_i32 = arith.constant 0 : i32
    %c0_i32_0 = arith.constant 0 : i32
    %c0_i32_1 = arith.constant 0 : i32
    return %c0_i32, %c0_i32_0 : i32, i32
  }
  func.func @transform_3(%arg0: i32) -> (i32, i32) {
    %c0_i32 = arith.constant 0 : i32
    %c0_i32_0 = arith.constant 0 : i32
    %c0_i32_1 = arith.constant 0 : i32
    return %c0_i32, %c0_i32_0 : i32, i32
  }
  func.func @transform_4(%arg0: i32) -> (i32, i32) {
    %c0_i32 = arith.constant 0 : i32
    %c0_i32_0 = arith.constant 0 : i32
    %c0_i32_1 = arith.constant 0 : i32
    return %c0_i32, %c0_i32_0 : i32, i32
  }
  func.func @transform_5(%arg0: i32) -> (i32, i32) {
    %c0_i32 = arith.constant 0 : i32
    %c0_i32_0 = arith.constant 0 : i32
    %c0_i32_1 = arith.constant 0 : i32
    return %c0_i32, %c0_i32_0 : i32, i32
  }
  func.func @transform_6(%arg0: i32) -> (i32, i32) {
    %c0_i32 = arith.constant 0 : i32
    %c0_i32_0 = arith.constant 0 : i32
    return %c0_i32, %arg0 : i32, i32
  }
}

module attributes {stable_mosaic.version = 11 : i64} {
  func.func @_conv3_kernel(%arg0: i32, %arg1: memref<104x72xf32, #tpu.memory_space<vmem>>, %arg2: memref<72x96xf32, #tpu.memory_space<vmem>>, %arg3: memref<1x96xf32, #tpu.memory_space<vmem>>, %arg4: memref<104x96xf32, #tpu.memory_space<vmem>>) attributes {dimension_semantics = [#tpu.dimension_semantics<parallel>], iteration_bounds = array<i64: 1>, scalar_prefetch = 0 : i64, scratch_operands = 0 : i64, tpu.core_type = #tpu.core_type<tc>, window_params = [{transform_indices = @transform_0, window_bounds = array<i64: 104, 72>}, {pipeline_mode = #tpu.pipeline_mode<synchronous>, transform_indices = @transform_1, window_bounds = array<i64: 72, 96>}, {pipeline_mode = #tpu.pipeline_mode<synchronous>, transform_indices = @transform_2, window_bounds = array<i64: 1, 96>}, {transform_indices = @transform_3, window_bounds = array<i64: 104, 96>}]} {
    %c0 = arith.constant 0 : index
    %c0_0 = arith.constant 0 : index
    %0 = vector.load %arg1[%c0, %c0_0] : memref<104x72xf32, #tpu.memory_space<vmem>>, vector<104x72xf32>
    %c0_1 = arith.constant 0 : index
    %c0_2 = arith.constant 0 : index
    %1 = vector.load %arg2[%c0_1, %c0_2] : memref<72x96xf32, #tpu.memory_space<vmem>>, vector<72x96xf32>
    %cst = arith.constant dense<0.000000e+00> : vector<104x96xf32>
    %2 = tpu.matmul %0, %1, %cst {dimension_numbers = #tpu.dot_dimension_numbers<[1], [0], [0], [1], [0, 0, 1, 1], [], []>} : vector<104x72xf32>, vector<72x96xf32>, vector<104x96xf32> -> vector<104x96xf32>
    %c0_3 = arith.constant 0 : index
    %c0_4 = arith.constant 0 : index
    %3 = vector.load %arg3[%c0_3, %c0_4] : memref<1x96xf32, #tpu.memory_space<vmem>>, vector<1x96xf32>
    %4 = vector.broadcast %3 : vector<1x96xf32> to vector<104x96xf32>
    %5 = arith.addf %2, %4 : vector<104x96xf32>
    %c0_5 = arith.constant 0 : index
    %c0_6 = arith.constant 0 : index
    %6 = vector.load %arg4[%c0_5, %c0_6] : memref<104x96xf32, #tpu.memory_space<vmem>>, vector<104x96xf32>
    tpu.vector_store %arg4[%c0_5, %c0_6], %5 {strides = array<i32>} : memref<104x96xf32, #tpu.memory_space<vmem>>, vector<104x96xf32>,
    return
  }
  func.func @transform_0(%arg0: i32) -> (i32, i32) {
    %c0_i32 = arith.constant 0 : i32
    %c0_i32_0 = arith.constant 0 : i32
    return %arg0, %c0_i32 : i32, i32
  }
  func.func @transform_1(%arg0: i32) -> (i32, i32) {
    %c0_i32 = arith.constant 0 : i32
    %c0_i32_0 = arith.constant 0 : i32
    %c0_i32_1 = arith.constant 0 : i32
    return %c0_i32, %c0_i32_0 : i32, i32
  }
  func.func @transform_2(%arg0: i32) -> (i32, i32) {
    %c0_i32 = arith.constant 0 : i32
    %c0_i32_0 = arith.constant 0 : i32
    %c0_i32_1 = arith.constant 0 : i32
    return %c0_i32, %c0_i32_0 : i32, i32
  }
  func.func @transform_3(%arg0: i32) -> (i32, i32) {
    %c0_i32 = arith.constant 0 : i32
    %c0_i32_0 = arith.constant 0 : i32
    return %arg0, %c0_i32 : i32, i32
  }
}

</mosaic_0001>

<llo_original>
// kernel: tile.8
$region0: #{tile.8}
  #allocation2 [shape = 's32[1]{0}', space=sflag, size = 0x4, scoped, tag = 'scoped memory for tile.8']
  %s0 = inlined_call_operand.hbm [shape: f32[6], index: 0, kind: input, shape index: {}]
  %s1 = inlined_call_operand.vmem [shape: f32[16,6], index: 1, kind: output, shape index: {}]
  $region1: #{tile.8} parent=0
    #allocation0 [shape = 'u8[512]{0}', space=vmem, size = 0x400, scoped, tag = 'operand span for operand 0']
    #allocation1 [shape = 's32[1]{0}', space=sflag, size = 0x4, scoped, tag = 'scoped memory for tile.8']
    %2 = vsyncpa [#allocation1], 0
    // Predicated region
    $region2: #{tile.8} parent=1 // pred_check
      _
    $region3: #{tile.8} parent=1 // pred_check_branch
      %4 = sbr.rel (0) target = $region5
    $region4: #{tile.8} parent=1 // pred_region
      %s6 = ssub.s32 16, 16
      %7 = vsyncadd [#allocation1], %s6
      %s9 = sshll.u32 [#allocation0], 4
      %s10 = int_to_ptr.vmem [resolvable:$true] %s9
      %12 = dma.hbm_to_vmem [thread:$0]  %s0, 16, %s10, [#allocation1]
    $region5: #{tile.8} parent=1 // pred_fallthru
      _
    // Predicated region
    $region6: #{tile.8} parent=1 // pred_check
      _
    $region7: #{tile.8} parent=1 // pred_check_branch
      %14 = sbr.rel (0) target = $region9
    $region8: #{tile.8} parent=1 // pred_region
      %15 = dma.done [#allocation1], 16
    $region9: #{tile.8} parent=1 // pred_fallthru
      _
    %v16 = vld [vmem:[#allocation0] ss:$0 sm:$0xff]
    %17 = vst [vmem:[%s1] sm:$0xff] %v16
    %s18 = scalar_lea.vmem %s1, 8
    %19 = vst [vmem:[%s18] sm:$0xff] %v16
    %20 = vsyncpa [#allocation1], 1

// kernel: tile.9
$region0: #{tile.9}
  %s0 = inlined_call_operand.vmem [shape: f32[16,6], index: 0, kind: input, shape index: {}]
  %s1 = inlined_call_operand.vmem [shape: f32[1,96], index: 1, kind: output, shape index: {}]
  $region1: #{tile.9} parent=0
    #allocation0 [shape = 'u8[4096]{0}', space=vmem, size = 0x1000, scoped, tag = 'scoped mem for output reshape']
    %v2 = vld [vmem:[%s0] sm:$0x1]
    %vm3 = vcmask 48128
    %4 = vst.msk [vmem:[#allocation0] sm:$0x1] %vm3, %v2
    %s5 = scalar_lea.vmem %s0, 15
    %v6 = vld [vmem:[%s5] sm:$0x1]
    %7 = vrot.lane.b32.xlu0 %v6, 90
    %v8 = vpop.permute.xlu0 %7
    %vm9 = vcmask 786128
    %10 = vst.msk [vmem:[#allocation0] sm:$0x1] %vm9, %v8
    %s11 = scalar_lea.vmem %s0, 14
    %v12 = vld [vmem:[%s11] sm:$0x1]
    %13 = vrot.lane.b32.xlu0 %v12, 84
    %v14 = vpop.permute.xlu0 %13
    %vm15 = vcmask 736928
    %16 = vst.msk [vmem:[#allocation0] sm:$0x1] %vm15, %v14
    %s17 = scalar_lea.vmem %s0, 13
    %v18 = vld [vmem:[%s17] sm:$0x1]
    %19 = vrot.lane.b32.xlu0 %v18, 78
    %v20 = vpop.permute.xlu0 %19
    %vm21 = vcmask 687728
    %22 = vst.msk [vmem:[#allocation0] sm:$0x1] %vm21, %v20
    %s23 = scalar_lea.vmem %s0, 12
    %v24 = vld [vmem:[%s23] sm:$0x1]
    %25 = vrot.lane.b32.xlu0 %v24, 72
    %v26 = vpop.permute.xlu0 %25
    %vm27 = vcmask 638528
    %28 = vst.msk [vmem:[#allocation0] sm:$0x1] %vm27, %v26
    %s29 = scalar_lea.vmem %s0, 11
    %v30 = vld [vmem:[%s29] sm:$0x1]
    %31 = vrot.lane.b32.xlu0 %v30, 66
    %v32 = vpop.permute.xlu0 %31
    %vm33 = vcmask 589328
    %34 = vst.msk [vmem:[#allocation0] sm:$0x1] %vm33, %v32
    %s35 = scalar_lea.vmem %s0, 10
    %v36 = vld [vmem:[%s35] sm:$0x1]
    %37 = vrot.lane.b32.xlu0 %v36, 60
    %v38 = vpop.permute.xlu0 %37
    %vm39 = vcmask 540128
    %40 = vst.msk [vmem:[#allocation0] sm:$0x1] %vm39, %v38
    %s41 = scalar_lea.vmem %s0, 9
    %v42 = vld [vmem:[%s41] sm:$0x1]
    %43 = vrot.lane.b32.xlu0 %v42, 54
    %v44 = vpop.permute.xlu0 %43
    %vm45 = vcmask 490928
    %46 = vst.msk [vmem:[#allocation0] sm:$0x1] %vm45, %v44
    %s47 = scalar_lea.vmem %s0, 8
    %v48 = vld [vmem:[%s47] sm:$0x1]
    %49 = vrot.lane.b32.xlu0 %v48, 48
    %v50 = vpop.permute.xlu0 %49
    %vm51 = vcmask 441728
    %52 = vst.msk [vmem:[#allocation0] sm:$0x1] %vm51, %v50
    %s53 = scalar_lea.vmem %s0, 7
    %v54 = vld [vmem:[%s53] sm:$0x1]
    %55 = vrot.lane.b32.xlu0 %v54, 42
    %v56 = vpop.permute.xlu0 %55
    %vm57 = vcmask 392528
    %58 = vst.msk [vmem:[#allocation0] sm:$0x1] %vm57, %v56
    %s59 = scalar_lea.vmem %s0, 6
    %v60 = vld [vmem:[%s59] sm:$0x1]
    %61 = vrot.lane.b32.xlu0 %v60, 36
    %v62 = vpop.permute.xlu0 %61
    %vm63 = vcmask 343328
    %64 = vst.msk [vmem:[#allocation0] sm:$0x1] %vm63, %v62
    %s65 = scalar_lea.vmem %s0, 5
    %v66 = vld [vmem:[%s65] sm:$0x1]
    %67 = vrot.lane.b32.xlu0 %v66, 30
    %v68 = vpop.permute.xlu0 %67
    %vm69 = vcmask 294128
    %70 = vst.msk [vmem:[#allocation0] sm:$0x1] %vm69, %v68
    %s71 = scalar_lea.vmem %s0, 4
    %v72 = vld [vmem:[%s71] sm:$0x1]
    %73 = vrot.lane.b32.xlu0 %v72, 24
    %v74 = vpop.permute.xlu0 %73
    %vm75 = vcmask 244928
    %76 = vst.msk [vmem:[#allocation0] sm:$0x1] %vm75, %v74
    %s77 = scalar_lea.vmem %s0, 3
    %v78 = vld [vmem:[%s77] sm:$0x1]
    %79 = vrot.lane.b32.xlu0 %v78, 18
    %v80 = vpop.permute.xlu0 %79
    %vm81 = vcmask 195728
    %82 = vst.msk [vmem:[#allocation0] sm:$0x1] %vm81, %v80
    %s83 = scalar_lea.vmem %s0, 2
    %v84 = vld [vmem:[%s83] sm:$0x1]
    %85 = vrot.lane.b32.xlu0 %v84, 12
    %v86 = vpop.permute.xlu0 %85
    %vm87 = vcmask 146528
    %88 = vst.msk [vmem:[#allocation0] sm:$0x1] %vm87, %v86
    %s89 = scalar_lea.vmem %s0, 1
    %v90 = vld [vmem:[%s89] sm:$0x1]
    %91 = vrot.lane.b32.xlu0 %v90, 6
    %v92 = vpop.permute.xlu0 %91
    %vm93 = vcmask 97328
    %94 = vst.msk [vmem:[#allocation0] sm:$0x1] %vm93, %v92
    %s96 = sshllo.u32 0, 1
    %v98 = vld [vmem:[#allocation0] sm:%s96]
    %s99 = sshllo.u32 0, 1
    %100 = vst [vmem:[%s1] sm:%s99] %v98

// kernel: squeeze.35
$region0: #{squeeze.35}
  %s0 = inlined_call_operand.vmem [shape: f32[2,1,5,5], index: 0, kind: input, shape index: {}]
  %s1 = inlined_call_operand.vmem [shape: f32[1,50], index: 1, kind: output, shape index: {}]
  $region1: #{squeeze.35} parent=0
    #allocation0 [shape = 'u8[4096]{0}', space=vmem, size = 0x1000, scoped, tag = 'scoped mem for output reshape']
    %v2 = vld [vmem:[%s0] sm:$0x1]
    %vm3 = vcmask 39936
    %4 = vst.msk [vmem:[#allocation0] sm:$0x1] %vm3, %v2
    %s5 = scalar_lea.vmem %s0, 12
    %v6 = vld [vmem:[%s5] sm:$0x1]
    %7 = vrot.lane.b32.xlu0 %v6, 45
    %v8 = vpop.permute.xlu0 %7
    %vm9 = vcmask 408936
    %10 = vst.msk [vmem:[#allocation0] sm:$0x1] %vm9, %v8
    %s11 = scalar_lea.vmem %s0, 11
    %v12 = vld [vmem:[%s11] sm:$0x1]
    %13 = vrot.lane.b32.xlu0 %v12, 40
    %v14 = vpop.permute.xlu0 %13
    %vm15 = vcmask 367936
    %16 = vst.msk [vmem:[#allocation0] sm:$0x1] %vm15, %v14
    %s17 = scalar_lea.vmem %s0, 10
    %v18 = vld [vmem:[%s17] sm:$0x1]
    %19 = vrot.lane.b32.xlu0 %v18, 35
    %v20 = vpop.permute.xlu0 %19
    %vm21 = vcmask 326936
    %22 = vst.msk [vmem:[#allocation0] sm:$0x1] %vm21, %v20
    %s23 = scalar_lea.vmem %s0, 9
    %v24 = vld [vmem:[%s23] sm:$0x1]
    %25 = vrot.lane.b32.xlu0 %v24, 30
    %v26 = vpop.permute.xlu0 %25
    %vm27 = vcmask 285936
    %28 = vst.msk [vmem:[#allocation0] sm:$0x1] %vm27, %v26
    %s29 = scalar_lea.vmem %s0, 8
    %v30 = vld [vmem:[%s29] sm:$0x1]
    %31 = vrot.lane.b32.xlu0 %v30, 25
    %v32 = vpop.permute.xlu0 %31
    %vm33 = vcmask 244936
    %34 = vst.msk [vmem:[#allocation0] sm:$0x1] %vm33, %v32
    %s35 = scalar_lea.vmem %s0, 4
    %v36 = vld [vmem:[%s35] sm:$0x1]
    %37 = vrot.lane.b32.xlu0 %v36, 20
    %v38 = vpop.permute.xlu0 %37
    %vm39 = vcmask 203936
    %40 = vst.msk [vmem:[#allocation0] sm:$0x1] %vm39, %v38
    %s41 = scalar_lea.vmem %s0, 3
    %v42 = vld [vmem:[%s41] sm:$0x1]
    %43 = vrot.lane.b32.xlu0 %v42, 15
    %v44 = vpop.permute.xlu0 %43
    %vm45 = vcmask 162936
    %46 = vst.msk [vmem:[#allocation0] sm:$0x1] %vm45, %v44
    %s47 = scalar_lea.vmem %s0, 2
    %v48 = vld [vmem:[%s47] sm:$0x1]
    %49 = vrot.lane.b32.xlu0 %v48, 10
    %v50 = vpop.permute.xlu0 %49
    %vm51 = vcmask 121936
    %52 = vst.msk [vmem:[#allocation0] sm:$0x1] %vm51, %v50
    %s53 = scalar_lea.vmem %s0, 1
    %v54 = vld [vmem:[%s53] sm:$0x1]
    %55 = vrot.lane.b32.xlu0 %v54, 5
    %v56 = vpop.permute.xlu0 %55
    %vm57 = vcmask 80936
    %58 = vst.msk [vmem:[#allocation0] sm:$0x1] %vm57, %v56
    %s60 = sshllo.u32 0, 1
    %v62 = vld [vmem:[#allocation0] sm:%s60]
    %s63 = sshllo.u32 0, 1
    %64 = vst [vmem:[%s1] sm:%s63] %v62

// kernel: _model_forward_impl.2
$region0: #{_model_forward_impl.2}
  #allocation0 [shape = 'u32[]', space=smem, size = 0x4, offset = 0x4, fixed_abs, tag = 'smem constant byte address 0x4 - core index']
  #allocation1 [shape = 'u32[144,128]{1,0:T(1,128)}', space=vmem, size = 0x12000, scoped, tag = 'internal scratch']
  %s0 = inlined_call_operand.vmem [shape: f32[16,128], index: 0, kind: input, shape index: {}]
  %s1 = inlined_call_operand.vmem [shape: f32[24,16], index: 1, kind: input, shape index: {}]
  %s2 = inlined_call_operand.vmem [shape: f32[24,16], index: 2, kind: input, shape index: {}]
  %s3 = inlined_call_operand.vmem [shape: f32[24,1], index: 3, kind: input, shape index: {}]
  %s4 = inlined_call_operand.vmem [shape: f32[8,24], index: 4, kind: input, shape index: {}]
  %s5 = inlined_call_operand.vmem [shape: f32[8,1], index: 5, kind: input, shape index: {}]
  %s6 = inlined_call_operand.vmem [shape: f32[8,128], index: 6, kind: output, shape index: {}]
  %s7 = sld [smem:[#allocation0]]
  $region34: #{_model_forward_impl.2} parent=0
    _
  %s9 = ssub.s32 1, %s7
  %s10 = scalar_select 0, %s9, %s7
  // Predicated region
  $region2: #{_model_forward_impl.2} parent=0 // pred_check
    _
  $region3: #{_model_forward_impl.2} parent=0 // pred_check_branch
    %12 = sbr.rel (0) target = $region5
  $region4: #{_model_forward_impl.2} parent=0 // pred_region
    _
  $region5: #{_model_forward_impl.2} parent=0 // pred_fallthru
    _
  // Predicated region
  $region6: #{_model_forward_impl.2} parent=0 // pred_check
    _
  $region7: #{_model_forward_impl.2} parent=0 // pred_check_branch
    %14 = sbr.rel (0) target = $region9
  $region8: #{_model_forward_impl.2} parent=0 // pred_region
    _
  $region9: #{_model_forward_impl.2} parent=0 // pred_fallthru
    _
  // Predicated region
  $region10: #{_model_forward_impl.2} parent=0 // pred_check
    _
  $region11: #{_model_forward_impl.2} parent=0 // pred_check_branch
    %16 = sbr.rel (0) target = $region13
  $region12: #{_model_forward_impl.2} parent=0 // pred_region
    _
  $region13: #{_model_forward_impl.2} parent=0 // pred_fallthru
    _
  // Predicated region
  $region14: #{_model_forward_impl.2} parent=0 // pred_check
    _
  $region15: #{_model_forward_impl.2} parent=0 // pred_check_branch
    %18 = sbr.rel (0) target = $region17
  $region16: #{_model_forward_impl.2} parent=0 // pred_region
    _
  $region17: #{_model_forward_impl.2} parent=0 // pred_fallthru
    _
  // Predicated region
  $region18: #{_model_forward_impl.2} parent=0 // pred_check
    _
  $region19: #{_model_forward_impl.2} parent=0 // pred_check_branch
    %20 = sbr.rel (0) target = $region21
  $region20: #{_model_forward_impl.2} parent=0 // pred_region
    _
  $region21: #{_model_forward_impl.2} parent=0 // pred_fallthru
    _
  // Predicated region
  $region22: #{_model_forward_impl.2} parent=0 // pred_check
    _
  $region23: #{_model_forward_impl.2} parent=0 // pred_check_branch
    %22 = sbr.rel (0) target = $region25
  $region24: #{_model_forward_impl.2} parent=0 // pred_region
    _
  $region25: #{_model_forward_impl.2} parent=0 // pred_fallthru
    _
  %v23 = vld [vmem:[%s0] sm:$0xff]
  %v24 = vld [vmem:[%s0 + $0x8] sm:$0xff]
  %v25 = vld [vmem:[%s1] sm:$0xff]
  %v26 = vld [vmem:[%s1 + $0x8] sm:$0xff]
  %v27 = vld [vmem:[%s1 + $0x10] sm:$0xff]
  %v28 = vld [vmem:[%s3] sm:$0xff]
  %v29 = vld [vmem:[%s3 + $0x8] sm:$0xff]
  %v30 = vld [vmem:[%s3 + $0x10] sm:$0xff]
  %32 = vset.pattern.permute.xlu0 0
  %33 = vperm.xlu0 %32, %v28
  %v34 = vpop.permute.xlu0 %33
  %37 = vset.pattern.permute.xlu0 0
  %38 = vperm.xlu0 %37, %v29
  %v39 = vpop.permute.xlu0 %38
  %42 = vset.pattern.permute.xlu0 0
  %43 = vperm.xlu0 %42, %v30
  %v44 = vpop.permute.xlu0 %43
  %vm46 = vcmask 130048
  %v48 = vsel %vm46, %v25, 0
  %v51 = vsel %vm46, %v26, 0
  %v54 = vsel %vm46, %v27, 0
  %56 = vmatprep.subr.mxu0 0.0
  %57 = vmatpush1.msra.mxu0 %v23
  %58 = vmatprep.subr.mxu0 0.0
  %59 = vmatpush1.msra.mxu0 %v24
  %60 = vmatprep.subr.mxu0 0.0
  %61 = vmatpush1.msra.mxu0 0.0
  %62 = vmatprep.subr.mxu0 0.0
  %63 = vmatpush1.msra.mxu0 0.0
  %64 = vmatprep.subr.mxu0 0.0
  %65 = vmatpush1.msra.mxu0 0.0
  %66 = vmatprep.subr.mxu0 0.0
  %67 = vmatpush1.msra.mxu0 0.0
  %68 = vmatprep.subr.mxu0 0.0
  %69 = vmatpush1.msra.mxu0 0.0
  %70 = vmatprep.subr.mxu0 0.0
  %71 = vmatpush1.msra.mxu0 0.0
  %72 = vmatprep.subr.mxu0 0.0
  %73 = vmatpush1.msra.mxu0 0.0
  %74 = vmatprep.subr.mxu0 0.0
  %75 = vmatpush1.msra.mxu0 0.0
  %76 = vmatprep.subr.mxu0 0.0
  %77 = vmatpush1.msra.mxu0 0.0
  %78 = vmatprep.subr.mxu0 0.0
  %79 = vmatpush1.msra.mxu0 0.0
  %80 = vmatprep.subr.mxu0 0.0
  %81 = vmatpush1.msra.mxu0 0.0
  %82 = vmatprep.subr.mxu0 0.0
  %83 = vmatpush1.msra.mxu0 0.0
  %84 = vmatprep.subr.mxu0 0.0
  %85 = vmatpush1.msra.mxu0 0.0
  %86 = vmatprep.subr.mxu0 0.0
  %87 = vmatpush1.msra.mxu0 0.0
  %88 = vmatprep.subr.mxu0 0.0
  %89 = vmatpush1.msra.mxu0 0.0
  %90 = vmatprep.subr.mxu0 0.0
  %91 = vmatpush1.msra.mxu0 0.0
  %92 = vmatprep.subr.mxu0 0.0
  %93 = vmatpush1.msra.mxu0 0.0
  %94 = vmatprep.subr.mxu0 0.0
  %95 = vmatpush1.msra.mxu0 0.0
  %96 = vmatprep.subr.mxu0 0.0
  %97 = vmatpush1.msra.mxu0 0.0
  %98 = vmatprep.subr.mxu0 0.0
  %99 = vmatpush1.msra.mxu0 0.0
  %100 = vmatprep.subr.mxu0 0.0
  %101 = vmatpush1.msra.mxu0 0.0
  %102 = vmatprep.subr.mxu0 0.0
  %103 = vmatpush1.msra.mxu0 0.0
  %104 = vmatprep.subr.mxu0 0.0
  %105 = vmatpush1.msra.mxu0 0.0
  %106 = vmatprep.subr.mxu0 0.0
  %107 = vmatpush1.msra.mxu0 0.0
  %108 = vmatprep.subr.mxu0 0.0
  %109 = vmatpush1.msra.mxu0 0.0
  %110 = vmatprep.subr.mxu0 0.0
  %111 = vmatpush1.msra.mxu0 0.0
  %112 = vmatprep.subr.mxu0 0.0
  %113 = vmatpush1.msra.mxu0 0.0
  %114 = vmatprep.subr.mxu0 0.0
  %115 = vmatpush1.msra.mxu0 0.0
  %116 = vmatprep.subr.mxu0 0.0
  %117 = vmatpush1.msra.mxu0 0.0
  %118 = vmatprep.subr.mxu0 0.0
  %119 = vmatpush1.msra.mxu0 0.0
  %120 = vmatprep.mubr.f32.mxu0 0.0
  %121 = vmatmul.mubr.f32.gmra.mrb[0].mxu0 %v48
  %v122 = vpop.f32.mrb[0].mxu0
  %v123 = vadd.f32 %v34, %v122
  %v124 = vpop.f32.mrb[0].mxu0
  %125 = vmatprep.mubr.f32.mxu0 0.0
  %126 = vmatmul.mubr.f32.gmra.mrb[0].mxu0 %v51
  %v127 = vpop.f32.mrb[0].mxu0
  %v128 = vadd.f32 %v39, %v127
  %v129 = vpop.f32.mrb[0].mxu0
  %130 = vmatprep.mubr.f32.mxu0 0.0
  %131 = vmatmul.mubr.f32.gmra.mrb[0].mxu0 %v54
  %v132 = vpop.f32.mrb[0].mxu0
  %v133 = vadd.f32 %v44, %v132
  %v134 = vpop.f32.mrb[0].mxu0
  %135 = vdwg.mxu0
  %v136 = vmax.f32 %v123, 0.1
  %v137 = vmax.f32 %v128, 0.1
  %v138 = vmax.f32 %v133, 0.1
  %v139 = vmin.f32 %v136, 0.5
  %v140 = vmin.f32 %v137, 0.5
  %v141 = vmin.f32 %v138, 0.5
  %v142 = vld [vmem:[%s2] sm:$0xff]
  %v143 = vld [vmem:[%s2 + $0x8] sm:$0xff]
  %v144 = vld [vmem:[%s2 + $0x10] sm:$0xff]
  %v146 = vsel %vm46, %v142, 0
  %v149 = vsel %vm46, %v143, 0
  %v152 = vsel %vm46, %v144, 0
  %154 = vmatprep.subr.mxu0 0.0
  %155 = vmatpush1.msra.mxu0 %v23
  %156 = vmatprep.subr.mxu0 0.0
  %157 = vmatpush1.msra.mxu0 %v24
  %158 = vmatprep.subr.mxu0 0.0
  %159 = vmatpush1.msra.mxu0 0.0
  %160 = vmatprep.subr.mxu0 0.0
  %161 = vmatpush1.msra.mxu0 0.0
  %162 = vmatprep.subr.mxu0 0.0
  %163 = vmatpush1.msra.mxu0 0.0
  %164 = vmatprep.subr.mxu0 0.0
  %165 = vmatpush1.msra.mxu0 0.0
  %166 = vmatprep.subr.mxu0 0.0
  %167 = vmatpush1.msra.mxu0 0.0
  %168 = vmatprep.subr.mxu0 0.0
  %169 = vmatpush1.msra.mxu0 0.0
  %170 = vmatprep.subr.mxu0 0.0
  %171 = vmatpush1.msra.mxu0 0.0
  %172 = vmatprep.subr.mxu0 0.0
  %173 = vmatpush1.msra.mxu0 0.0
  %174 = vmatprep.subr.mxu0 0.0
  %175 = vmatpush1.msra.mxu0 0.0
  %176 = vmatprep.subr.mxu0 0.0
  %177 = vmatpush1.msra.mxu0 0.0
  %178 = vmatprep.subr.mxu0 0.0
  %179 = vmatpush1.msra.mxu0 0.0
  %180 = vmatprep.subr.mxu0 0.0
  %181 = vmatpush1.msra.mxu0 0.0
  %182 = vmatprep.subr.mxu0 0.0
  %183 = vmatpush1.msra.mxu0 0.0
  %184 = vmatprep.subr.mxu0 0.0
  %185 = vmatpush1.msra.mxu0 0.0
  %186 = vmatprep.subr.mxu0 0.0
  %187 = vmatpush1.msra.mxu0 0.0
  %188 = vmatprep.subr.mxu0 0.0
  %189 = vmatpush1.msra.mxu0 0.0
  %190 = vmatprep.subr.mxu0 0.0
  %191 = vmatpush1.msra.mxu0 0.0
  %192 = vmatprep.subr.mxu0 0.0
  %193 = vmatpush1.msra.mxu0 0.0
  %194 = vmatprep.subr.mxu0 0.0
  %195 = vmatpush1.msra.mxu0 0.0
  %196 = vmatprep.subr.mxu0 0.0
  %197 = vmatpush1.msra.mxu0 0.0
  %198 = vmatprep.subr.mxu0 0.0
  %199 = vmatpush1.msra.mxu0 0.0
  %200 = vmatprep.subr.mxu0 0.0
  %201 = vmatpush1.msra.mxu0 0.0
  %202 = vmatprep.subr.mxu0 0.0
  %203 = vmatpush1.msra.mxu0 0.0
  %204 = vmatprep.subr.mxu0 0.0
  %205 = vmatpush1.msra.mxu0 0.0
  %206 = vmatprep.subr.mxu0 0.0
  %207 = vmatpush1.msra.mxu0 0.0
  %208 = vmatprep.subr.mxu0 0.0
  %209 = vmatpush1.msra.mxu0 0.0
  %210 = vmatprep.subr.mxu0 0.0
  %211 = vmatpush1.msra.mxu0 0.0
  %212 = vmatprep.subr.mxu0 0.0
  %213 = vmatpush1.msra.mxu0 0.0
  %214 = vmatprep.subr.mxu0 0.0
  %215 = vmatpush1.msra.mxu0 0.0
  %216 = vmatprep.subr.mxu0 0.0
  %217 = vmatpush1.msra.mxu0 0.0
  %218 = vmatprep.mubr.f32.mxu0 0.0
  %219 = vmatmul.mubr.f32.gmra.mrb[0].mxu0 %v146
  %v220 = vpop.f32.mrb[0].mxu0
  %v221 = vadd.f32 0.0, %v220
  %v222 = vpop.f32.mrb[0].mxu0
  %223 = vmatprep.mubr.f32.mxu0 0.0
  %224 = vmatmul.mubr.f32.gmra.mrb[0].mxu0 %v149
  %v225 = vpop.f32.mrb[0].mxu0
  %v226 = vadd.f32 0.0, %v225
  %v227 = vpop.f32.mrb[0].mxu0
  %228 = vmatprep.mubr.f32.mxu0 0.0
  %229 = vmatmul.mubr.f32.gmra.mrb[0].mxu0 %v152
  %v230 = vpop.f32.mrb[0].mxu0
  %v231 = vadd.f32 0.0, %v230
  %v232 = vpop.f32.mrb[0].mxu0
  %233 = vdwg.mxu0
  %v234 = vmul.f32 %v139, %v221
  %v235 = vmul.f32 %v140, %v226
  %v236 = vmul.f32 %v141, %v231
  %v237 = vld [vmem:[%s4] sm:$0xff]
  %v238 = vld [vmem:[%s5] sm:$0xff]
  %240 = vset.pattern.permute.xlu0 0
  %241 = vperm.xlu0 %240, %v238
  %v242 = vpop.permute.xlu0 %241
  %vm244 = vcmask 195584
  %v246 = vsel %vm244, %v237, 0
  %248 = vmatprep.subr.mxu0 0.0
  %249 = vmatpush1.msra.mxu0 %v234
  %250 = vmatprep.subr.mxu0 0.0
  %251 = vmatpush1.msra.mxu0 %v235
  %252 = vmatprep.subr.mxu0 0.0
  %253 = vmatpush1.msra.mxu0 %v236
  %254 = vmatprep.subr.mxu0 0.0
  %255 = vmatpush1.msra.mxu0 0.0
  %256 = vmatprep.subr.mxu0 0.0
  %257 = vmatpush1.msra.mxu0 0.0
  %258 = vmatprep.subr.mxu0 0.0
  %259 = vmatpush1.msra.mxu0 0.0
  %260 = vmatprep.subr.mxu0 0.0
  %261 = vmatpush1.msra.mxu0 0.0
  %262 = vmatprep.subr.mxu0 0.0
  %263 = vmatpush1.msra.mxu0 0.0
  %264 = vmatprep.subr.mxu0 0.0
  %265 = vmatpush1.msra.mxu0 0.0
  %266 = vmatprep.subr.mxu0 0.0
  %267 = vmatpush1.msra.mxu0 0.0
  %268 = vmatprep.subr.mxu0 0.0
  %269 = vmatpush1.msra.mxu0 0.0
  %270 = vmatprep.subr.mxu0 0.0
  %271 = vmatpush1.msra.mxu0 0.0
  %272 = vmatprep.subr.mxu0 0.0
  %273 = vmatpush1.msra.mxu0 0.0
  %274 = vmatprep.subr.mxu0 0.0
  %275 = vmatpush1.msra.mxu0 0.0
  %276 = vmatprep.subr.mxu0 0.0
  %277 = vmatpush1.msra.mxu0 0.0
  %278 = vmatprep.subr.mxu0 0.0
  %279 = vmatpush1.msra.mxu0 0.0
  %280 = vmatprep.subr.mxu0 0.0
  %281 = vmatpush1.msra.mxu0 0.0
  %282 = vmatprep.subr.mxu0 0.0
  %283 = vmatpush1.msra.mxu0 0.0
  %284 = vmatprep.subr.mxu0 0.0
  %285 = vmatpush1.msra.mxu0 0.0
  %286 = vmatprep.subr.mxu0 0.0
  %287 = vmatpush1.msra.mxu0 0.0
  %288 = vmatprep.subr.mxu0 0.0
  %289 = vmatpush1.msra.mxu0 0.0
  %290 = vmatprep.subr.mxu0 0.0
  %291 = vmatpush1.msra.mxu0 0.0
  %292 = vmatprep.subr.mxu0 0.0
  %293 = vmatpush1.msra.mxu0 0.0
  %294 = vmatprep.subr.mxu0 0.0
  %295 = vmatpush1.msra.mxu0 0.0
  %296 = vmatprep.subr.mxu0 0.0
  %297 = vmatpush1.msra.mxu0 0.0
  %298 = vmatprep.subr.mxu0 0.0
  %299 = vmatpush1.msra.mxu0 0.0
  %300 = vmatprep.subr.mxu0 0.0
  %301 = vmatpush1.msra.mxu0 0.0
  %302 = vmatprep.subr.mxu0 0.0
  %303 = vmatpush1.msra.mxu0 0.0
  %304 = vmatprep.subr.mxu0 0.0
  %305 = vmatpush1.msra.mxu0 0.0
  %306 = vmatprep.subr.mxu0 0.0
  %307 = vmatpush1.msra.mxu0 0.0
  %308 = vmatprep.subr.mxu0 0.0
  %309 = vmatpush1.msra.mxu0 0.0
  %310 = vmatprep.subr.mxu0 0.0
  %311 = vmatpush1.msra.mxu0 0.0
  %312 = vmatprep.mubr.f32.mxu0 0.0
  %313 = vmatmul.mubr.f32.gmra.mrb[0].mxu0 %v246
  %v314 = vpop.f32.mrb[0].mxu0
  %v315 = vadd.f32 %v242, %v314
  %v316 = vpop.f32.mrb[0].mxu0
  %317 = vdwg.mxu0
  %v318 = vmax.f32 %v315, 0.1
  %v319 = vmin.f32 %v318, 0.5
  %320 = vst [vmem:[%s6] sm:$0xff] %v319
  // Predicated region
  $region26: #{_model_forward_impl.2} parent=0 // pred_check
    _
  $region27: #{_model_forward_impl.2} parent=0 // pred_check_branch
    %322 = sbr.rel (0) target = $region29
  $region28: #{_model_forward_impl.2} parent=0 // pred_region
    _
  $region29: #{_model_forward_impl.2} parent=0 // pred_fallthru
    _
  // Predicated region
  $region30: #{_model_forward_impl.2} parent=0 // pred_check
    _
  $region31: #{_model_forward_impl.2} parent=0 // pred_check_branch
    %324 = sbr.rel (0) target = $region33
  $region32: #{_model_forward_impl.2} parent=0 // pred_region
    _
  $region33: #{_model_forward_impl.2} parent=0 // pred_fallthru
    _

// kernel: _model_forward_impl.3
$region0: #{_model_forward_impl.3}
  #allocation0 [shape = 'u32[]', space=smem, size = 0x4, offset = 0x4, fixed_abs, tag = 'smem constant byte address 0x4 - core index']
  #allocation1 [shape = 'u32[144,128]{1,0:T(1,128)}', space=vmem, size = 0x12000, scoped, tag = 'internal scratch']
  %s0 = inlined_call_operand.vmem [shape: f32[104,72], index: 0, kind: input, shape index: {}]
  %s1 = inlined_call_operand.vmem [shape: f32[72,96], index: 1, kind: input, shape index: {}]
  %s2 = inlined_call_operand.vmem [shape: f32[1,96], index: 2, kind: input, shape index: {}]
  %s3 = inlined_call_operand.vmem [shape: f32[104,96], index: 3, kind: output, shape index: {}]
  %s4 = sld [smem:[#allocation0]]
  $region22: #{_model_forward_impl.3} parent=0
    _
  %s6 = ssub.s32 1, %s4
  %s7 = scalar_select 0, %s6, %s4
  // Predicated region
  $region2: #{_model_forward_impl.3} parent=0 // pred_check
    _
  $region3: #{_model_forward_impl.3} parent=0 // pred_check_branch
    %9 = sbr.rel (0) target = $region5
  $region4: #{_model_forward_impl.3} parent=0 // pred_region
    _
  $region5: #{_model_forward_impl.3} parent=0 // pred_fallthru
    _
  // Predicated region
  $region6: #{_model_forward_impl.3} parent=0 // pred_check
    _
  $region7: #{_model_forward_impl.3} parent=0 // pred_check_branch
    %11 = sbr.rel (0) target = $region9
  $region8: #{_model_forward_impl.3} parent=0 // pred_region
    _
  $region9: #{_model_forward_impl.3} parent=0 // pred_fallthru
    _
  // Predicated region
  $region10: #{_model_forward_impl.3} parent=0 // pred_check
    _
  $region11: #{_model_forward_impl.3} parent=0 // pred_check_branch
    %13 = sbr.rel (0) target = $region13
  $region12: #{_model_forward_impl.3} parent=0 // pred_region
    _
  $region13: #{_model_forward_impl.3} parent=0 // pred_fallthru
    _
  %v14 = vld [vmem:[%s0] sm:$0xff]
  %v15 = vld [vmem:[%s0 + $0x8] sm:$0xff]
  %v16 = vld [vmem:[%s0 + $0x10] sm:$0xff]
  %v17 = vld [vmem:[%s0 + $0x18] sm:$0xff]
  %v18 = vld [vmem:[%s0 + $0x20] sm:$0xff]
  %v19 = vld [vmem:[%s0 + $0x28] sm:$0xff]
  %v20 = vld [vmem:[%s0 + $0x30] sm:$0xff]
  %v21 = vld [vmem:[%s0 + $0x38] sm:$0xff]
  %v22 = vld [vmem:[%s0 + $0x40] sm:$0xff]
  %v23 = vld [vmem:[%s0 + $0x48] sm:$0xff]
  %v24 = vld [vmem:[%s0 + $0x50] sm:$0xff]
  %v25 = vld [vmem:[%s0 + $0x58] sm:$0xff]
  %v26 = vld [vmem:[%s0 + $0x60] sm:$0xff]
  %v27 = vld [vmem:[%s1] sm:$0xff]
  %v28 = vld [vmem:[%s1 + $0x8] sm:$0xff]
  %v29 = vld [vmem:[%s1 + $0x10] sm:$0xff]
  %v30 = vld [vmem:[%s1 + $0x18] sm:$0xff]
  %v31 = vld [vmem:[%s1 + $0x20] sm:$0xff]
  %v32 = vld [vmem:[%s1 + $0x28] sm:$0xff]
  %v33 = vld [vmem:[%s1 + $0x30] sm:$0xff]
  %v34 = vld [vmem:[%s1 + $0x38] sm:$0xff]
  %v35 = vld [vmem:[%s1 + $0x40] sm:$0xff]
  %v36 = vld [vmem:[%s2] sm:$0x1]
  %v38 = vlaneseq
  %v39 = vshrl.u32 %v38, 7
  %v40 = vsub.s32 0, %v39
  %v41 = vrot.slane %v36, %v40
  %vm43 = vcmask 588800
  %v45 = vsel %vm43, %v14, 0
  %v48 = vsel %vm43, %v15, 0
  %v51 = vsel %vm43, %v16, 0
  %v54 = vsel %vm43, %v17, 0
  %v57 = vsel %vm43, %v18, 0
  %v60 = vsel %vm43, %v19, 0
  %v63 = vsel %vm43, %v20, 0
  %v66 = vsel %vm43, %v21, 0
  %v69 = vsel %vm43, %v22, 0
  %v72 = vsel %vm43, %v23, 0
  %v75 = vsel %vm43, %v24, 0
  %v78 = vsel %vm43, %v25, 0
  %v81 = vsel %vm43, %v26, 0
  %83 = vmatprep.subr.mxu0 0.0
  %84 = vmatpush1.msra.mxu0 %v27
  %85 = vmatprep.subr.mxu0 0.0
  %86 = vmatpush1.msra.mxu0 %v28
  %87 = vmatprep.subr.mxu0 0.0
  %88 = vmatpush1.msra.mxu0 %v29
  %89 = vmatprep.subr.mxu0 0.0
  %90 = vmatpush1.msra.mxu0 %v30
  %91 = vmatprep.subr.mxu0 0.0
  %92 = vmatpush1.msra.mxu0 %v31
  %93 = vmatprep.subr.mxu0 0.0
  %94 = vmatpush1.msra.mxu0 %v32
  %95 = vmatprep.subr.mxu0 0.0
  %96 = vmatpush1.msra.mxu0 %v33
  %97 = vmatprep.subr.mxu0 0.0
  %98 = vmatpush1.msra.mxu0 %v34
  %99 = vmatprep.subr.mxu0 0.0
  %100 = vmatpush1.msra.mxu0 %v35
  %101 = vmatprep.subr.mxu0 0.0
  %102 = vmatpush1.msra.mxu0 0.0
  %103 = vmatprep.subr.mxu0 0.0
  %104 = vmatpush1.msra.mxu0 0.0
  %105 = vmatprep.subr.mxu0 0.0
  %106 = vmatpush1.msra.mxu0 0.0
  %107 = vmatprep.subr.mxu0 0.0
  %108 = vmatpush1.msra.mxu0 0.0
  %109 = vmatprep.subr.mxu0 0.0
  %110 = vmatpush1.msra.mxu0 0.0
  %111 = vmatprep.subr.mxu0 0.0
  %112 = vmatpush1.msra.mxu0 0.0
  %113 = vmatprep.subr.mxu0 0.0
  %114 = vmatpush1.msra.mxu0 0.0
  %115 = vmatprep.subr.mxu0 0.0
  %116 = vmatpush1.msra.mxu0 0.0
  %117 = vmatprep.subr.mxu0 0.0
  %118 = vmatpush1.msra.mxu0 0.0
  %119 = vmatprep.subr.mxu0 0.0
  %120 = vmatpush1.msra.mxu0 0.0
  %121 = vmatprep.subr.mxu0 0.0
  %122 = vmatpush1.msra.mxu0 0.0
  %123 = vmatprep.subr.mxu0 0.0
  %124 = vmatpush1.msra.mxu0 0.0
  %125 = vmatprep.subr.mxu0 0.0
  %126 = vmatpush1.msra.mxu0 0.0
  %127 = vmatprep.subr.mxu0 0.0
  %128 = vmatpush1.msra.mxu0 0.0
  %129 = vmatprep.subr.mxu0 0.0
  %130 = vmatpush1.msra.mxu0 0.0
  %131 = vmatprep.subr.mxu0 0.0
  %132 = vmatpush1.msra.mxu0 0.0
  %133 = vmatprep.subr.mxu0 0.0
  %134 = vmatpush1.msra.mxu0 0.0
  %135 = vmatprep.subr.mxu0 0.0
  %136 = vmatpush1.msra.mxu0 0.0
  %137 = vmatprep.subr.mxu0 0.0
  %138 = vmatpush1.msra.mxu0 0.0
  %139 = vmatprep.subr.mxu0 0.0
  %140 = vmatpush1.msra.mxu0 0.0
  %141 = vmatprep.subr.mxu0 0.0
  %142 = vmatpush1.msra.mxu0 0.0
  %143 = vmatprep.subr.mxu0 0.0
  %144 = vmatpush1.msra.mxu0 0.0
  %145 = vmatprep.subr.mxu0 0.0
  %146 = vmatpush1.msra.mxu0 0.0
  %147 = vmatprep.mubr.f32.mxu0 0.0
  %148 = vmatmul.mubr.f32.gmra.mrb[0].mxu0 %v45
  %v149 = vpop.f32.mrb[0].mxu0
  %v150 = vadd.f32 %v41, %v149
  %v151 = vpop.f32.mrb[0].mxu0
  %152 = vmatprep.mubr.f32.mxu0 0.0
  %153 = vmatmul.mubr.f32.gmra.mrb[0].mxu0 %v48
  %v154 = vpop.f32.mrb[0].mxu0
  %v155 = vadd.f32 %v41, %v154
  %v156 = vpop.f32.mrb[0].mxu0
  %157 = vmatprep.mubr.f32.mxu0 0.0
  %158 = vmatmul.mubr.f32.gmra.mrb[0].mxu0 %v51
  %v159 = vpop.f32.mrb[0].mxu0
  %v160 = vadd.f32 %v41, %v159
  %v161 = vpop.f32.mrb[0].mxu0
  %162 = vmatprep.mubr.f32.mxu0 0.0
  %163 = vmatmul.mubr.f32.gmra.mrb[0].mxu0 %v54
  %v164 = vpop.f32.mrb[0].mxu0
  %v165 = vadd.f32 %v41, %v164
  %v166 = vpop.f32.mrb[0].mxu0
  %167 = vmatprep.mubr.f32.mxu0 0.0
  %168 = vmatmul.mubr.f32.gmra.mrb[0].mxu0 %v57
  %v169 = vpop.f32.mrb[0].mxu0
  %v170 = vadd.f32 %v41, %v169
  %v171 = vpop.f32.mrb[0].mxu0
  %172 = vmatprep.mubr.f32.mxu0 0.0
  %173 = vmatmul.mubr.f32.gmra.mrb[0].mxu0 %v60
  %v174 = vpop.f32.mrb[0].mxu0
  %v175 = vadd.f32 %v41, %v174
  %v176 = vpop.f32.mrb[0].mxu0
  %177 = vmatprep.mubr.f32.mxu0 0.0
  %178 = vmatmul.mubr.f32.gmra.mrb[0].mxu0 %v63
  %v179 = vpop.f32.mrb[0].mxu0
  %v180 = vadd.f32 %v41, %v179
  %v181 = vpop.f32.mrb[0].mxu0
  %182 = vmatprep.mubr.f32.mxu0 0.0
  %183 = vmatmul.mubr.f32.gmra.mrb[0].mxu0 %v66
  %v184 = vpop.f32.mrb[0].mxu0
  %v185 = vadd.f32 %v41, %v184
  %v186 = vpop.f32.mrb[0].mxu0
  %187 = vmatprep.mubr.f32.mxu0 0.0
  %188 = vmatmul.mubr.f32.gmra.mrb[0].mxu0 %v69
  %v189 = vpop.f32.mrb[0].mxu0
  %v190 = vadd.f32 %v41, %v189
  %v191 = vpop.f32.mrb[0].mxu0
  %192 = vmatprep.mubr.f32.mxu0 0.0
  %193 = vmatmul.mubr.f32.gmra.mrb[0].mxu0 %v72
  %v194 = vpop.f32.mrb[0].mxu0
  %v195 = vadd.f32 %v41, %v194
  %v196 = vpop.f32.mrb[0].mxu0
  %197 = vmatprep.mubr.f32.mxu0 0.0
  %198 = vmatmul.mubr.f32.gmra.mrb[0].mxu0 %v75
  %v199 = vpop.f32.mrb[0].mxu0
  %v200 = vadd.f32 %v41, %v199
  %v201 = vpop.f32.mrb[0].mxu0
  %202 = vmatprep.mubr.f32.mxu0 0.0
  %203 = vmatmul.mubr.f32.gmra.mrb[0].mxu0 %v78
  %v204 = vpop.f32.mrb[0].mxu0
  %v205 = vadd.f32 %v41, %v204
  %v206 = vpop.f32.mrb[0].mxu0
  %207 = vmatprep.mubr.f32.mxu0 0.0
  %208 = vmatmul.mubr.f32.gmra.mrb[0].mxu0 %v81
  %v209 = vpop.f32.mrb[0].mxu0
  %v210 = vadd.f32 %v41, %v209
  %v211 = vpop.f32.mrb[0].mxu0
  %212 = vdwg.mxu0
  %vm213 = vcmask 785408
  %214 = vst.msk [vmem:[%s3] sm:$0xff] %vm213, %v150
  %215 = vst.msk [vmem:[%s3 + $0x8] sm:$0xff] %vm213, %v155
  %216 = vst.msk [vmem:[%s3 + $0x10] sm:$0xff] %vm213, %v160
  %217 = vst.msk [vmem:[%s3 + $0x18] sm:$0xff] %vm213, %v165
  %218 = vst.msk [vmem:[%s3 + $0x20] sm:$0xff] %vm213, %v170
  %219 = vst.msk [vmem:[%s3 + $0x28] sm:$0xff] %vm213, %v175
  %220 = vst.msk [vmem:[%s3 + $0x30] sm:$0xff] %vm213, %v180
  %221 = vst.msk [vmem:[%s3 + $0x38] sm:$0xff] %vm213, %v185
  %222 = vst.msk [vmem:[%s3 + $0x40] sm:$0xff] %vm213, %v190
  %223 = vst.msk [vmem:[%s3 + $0x48] sm:$0xff] %vm213, %v195
  %224 = vst.msk [vmem:[%s3 + $0x50] sm:$0xff] %vm213, %v200
  %225 = vst.msk [vmem:[%s3 + $0x58] sm:$0xff] %vm213, %v205
  %226 = vst.msk [vmem:[%s3 + $0x60] sm:$0xff] %vm213, %v210
  // Predicated region
  $region14: #{_model_forward_impl.3} parent=0 // pred_check
    _
  $region15: #{_model_forward_impl.3} parent=0 // pred_check_branch
    %228 = sbr.rel (0) target = $region17
  $region16: #{_model_forward_impl.3} parent=0 // pred_region
    _
  $region17: #{_model_forward_impl.3} parent=0 // pred_fallthru
    _
  // Predicated region
  $region18: #{_model_forward_impl.3} parent=0 // pred_check
    _
  $region19: #{_model_forward_impl.3} parent=0 // pred_check_branch
    %230 = sbr.rel (0) target = $region21
  $region20: #{_model_forward_impl.3} parent=0 // pred_region
    _
  $region21: #{_model_forward_impl.3} parent=0 // pred_fallthru
    _

</llo_original>
